<compile_context>
chip_gen: v5e
topology: v5e:2x2
jax: 0.10.0
libtpu: 0.0.40
codegen_flags: <defaults>
</compile_context>

<pallas_src>
import jax
import jax.numpy as jnp
from jax import lax
from jax.experimental import pallas as pl
from jax.experimental.pallas import tpu as pltpu

# ---------------- synthetic (small) SMPLH-style model sizes ----------------
NUM_BETAS = 10
NUM_BODY_JOINTS = 21
NUM_HAND_JOINTS = 15
NUM_JOINTS = NUM_BODY_JOINTS + 2 * NUM_HAND_JOINTS      # 51 == SMPLH.NUM_JOINTS
J_TOTAL = NUM_JOINTS + 1                                # 52 incl. root
V = 256                                                 # synthetic vertex count
F = 500                                                 # synthetic face count

J_PAD = 64                                              # joints padded to sublane multiple
K_RAW = NUM_BETAS + NUM_JOINTS * 9                      # 10 + 459 = 469
K_PAD = 512                                             # padded contraction axis (>= K_RAW + 2 bias rows)
NV3 = 3 * V                                             # 768 lane-dense vertex cols (axis-major)
NJ3 = J_TOTAL * 3                                       # 156 joint cols
NJ3_PAD = 256
N_PAD = NV3 + NJ3_PAD                                   # 1024 total output cols
BLEND_TN = 512                                          # N tile -> grid of 2 (2 parallel steps)
# TODO(synk): at real SMPLH sizes (V~6890) cap BLEND_TN per-generation vs VMEM
# (v7x 64 MiB) and consider int8 (v5e/v6e) / fp8 (v7x) weight storage.


# ============================== Pallas kernels ==============================

def _blend_kernel(x_ref, w_ref, o_ref):
    # x:(B,K_PAD) f32   w:(K_PAD,tn) bf16   o:(B,tn) f32
    # bf16 x bf16 -> f32 single-pass MXU matmul; bias rows are folded into w.
    o_ref[...] = jnp.dot(x_ref[...].astype(jnp.bfloat16), w_ref[...],
                         preferred_element_type=jnp.float32)


def fused_blendshapes(x, w_bf16):
    """out = [x | 1 | 1] @ [W ; bias_hi ; bias_lo], tiled over the lane-dense N axis."""
    B = x.shape[0]
    n_tiles = N_PAD // BLEND_TN
    return pl.pallas_call(
        _blend_kernel,
        out_shape=jax.ShapeDtypeStruct((B, N_PAD), jnp.float32),
        grid=(n_tiles,),
        in_specs=[
            pl.BlockSpec((B, K_PAD), lambda n: (0, 0)),
            pl.BlockSpec((K_PAD, BLEND_TN), lambda n: (0, n)),
        ],
        out_specs=pl.BlockSpec((B, BLEND_TN), lambda n: (0, n)),
        compiler_params=pltpu.CompilerParams(
            dimension_semantics=("parallel",),
            vmem_limit_bytes=32 * 1024 * 1024,
        ),
    )(x, w_bf16)


def _skinning_kernel(wt_ref, a_ref, v_ref, o_ref):
    # wt:(J_PAD,V) f32   a:(1,J_PAD,12) f32   v:(1,3,V) f32   o:(1,3,V) f32
    # T[k, v] = sum_j A_perm[j, k] * lbs_weights[v, j]   (trans-LHS matmul on MXU)
    T = lax.dot_general(
        a_ref[0], wt_ref[...],
        dimension_numbers=(((0,), (0,)), ((), ())),
        preferred_element_type=jnp.float32)                      # (12, V)
    p = v_ref[0]                                                 # (3, V)
    # A entries are pre-grouped [R col-x | col-y | col-z | t] -> three (3,V) FMAs.
    o_ref[0] = (T[0:3] * p[0:1] + T[3:6] * p[1:2]
                + T[6:9] * p[2:3] + T[9:12])


def lbs_skinning(lbs_w_t_pad, a_pad, v_posed_t):
    """Transposed LBS skinning: inputs/outputs lane-dense (last dim = V)."""
    B = v_posed_t.shape[0]
    return pl.pallas_call(
        _skinning_kernel,
        out_shape=jax.ShapeDtypeStruct((B, 3, V), jnp.float32),
        grid=(B,),
        in_specs=[
            pl.BlockSpec((J_PAD, V), lambda b: (0, 0)),
            pl.BlockSpec((1, J_PAD, 12), lambda b: (b, 0, 0)),
            pl.BlockSpec((1, 3, V), lambda b: (b, 0, 0)),
        ],
        out_specs=pl.BlockSpec((1, 3, V), lambda b: (b, 0, 0)),
        compiler_params=pltpu.CompilerParams(dimension_semantics=("parallel",)),
    )(lbs_w_t_pad, a_pad, v_posed_t)


# ============================== JAX glue =====================================

def batch_rodrigues(rot_vecs):
    """Axis-angle (N,3) -> rotation matrices (N,3,3).  (same math as smplx)"""
    eps = 1e-8
    angle = jnp.linalg.norm(rot_vecs + eps, axis=1, keepdims=True)           # (N,1)
    rot_dir = rot_vecs / angle
    cos = jnp.cos(angle)[:, None, :]                                         # (N,1,1)
    sin = jnp.sin(angle)[:, None, :]
    rx, ry, rz = jnp.split(rot_dir, 3, axis=1)
    zeros = jnp.zeros((rot_vecs.shape[0], 1), dtype=rot_vecs.dtype)
    K = jnp.concatenate(
        [zeros, -rz, ry, rz, zeros, -rx, -ry, rx, zeros], axis=1
    ).reshape(-1, 3, 3)
    ident = jnp.eye(3, dtype=rot_vecs.dtype)[None]
    return ident + sin * K + (1.0 - cos) * jnp.matmul(K, K)


def build_levels(parents):
    """Group joints by tree depth for level-wise (batched) chain products."""
    depth = [0] * len(parents)
    for i in range(1, len(parents)):
        depth[i] = depth[parents[i]] + 1
    levels = []
    for d in range(1, max(depth) + 1):
        idx = [i for i in range(len(parents)) if depth[i] == d]
        par = [parents[i] for i in idx]
        levels.append((jnp.array(idx, jnp.int32), jnp.array(par, jnp.int32)))
    return levels


def batch_rigid_transform(rot_mats, joints, parents, levels):
    """rot_mats:(B,J,3,3) joints:(B,J,3) -> posed_joints:(B,J,3), rel_transforms:(B,J,4,4)"""
    B, Jn = joints.shape[:2]
    joints = joints[..., None]                                               # (B,J,3,1)
    parents_arr = jnp.array(parents[1:], jnp.int32)
    rel_joints = joints.at[:, 1:].add(-joints[:, parents_arr])
    bottom = jnp.broadcast_to(
        jnp.array([0.0, 0.0, 0.0, 1.0], jnp.float32).reshape(1, 1, 1, 4), (B, Jn, 1, 4)
    )
    transforms_mat = jnp.concatenate(
        [jnp.concatenate([rot_mats, rel_joints], axis=-1), bottom], axis=2
    )                                                                        # (B,J,4,4)
    # TODO(synk): the per-level 4x4 chain products (tiny, ~6 batched matmuls) stay in plain JAX.
    glob = transforms_mat
    for idx, par in levels:
        glob = glob.at[:, idx].set(jnp.matmul(glob[:, par], transforms_mat[:, idx]))
    posed_joints = glob[:, :, :3, 3]
    joints_homo = jnp.concatenate(
        [joints, jnp.zeros((B, Jn, 1, 1), jnp.float32)], axis=2
    )
    tj = jnp.matmul(glob, joints_homo)                                       # (B,J,4,1)
    rel_transforms = glob - jnp.pad(tj, ((0, 0), (0, 0), (0, 0), (3, 0)))
    return posed_joints, rel_transforms


class Struct:
    def __init__(self, **kwargs):
        for k, v in kwargs.items():
            setattr(self, k, v)


class BodyModel:
    """JAX/Pallas port of the SMPLH-based BodyModel forward
    (model_type='smplh', use_vtx_selector=False, use_pca=False, flat_hand_mean=True)."""

    NUM_JOINTS = NUM_JOINTS

    def __init__(self, key):
        ks = jax.random.split(key, 6)
        # deterministic synthetic parameters (shapes match SMPLH semantics, small V)
        self.v_template = 0.5 * jax.random.normal(ks[0], (V, 3), jnp.float32)
        self.shapedirs = 0.05 * jax.random.normal(ks[1], (V, 3, NUM_BETAS), jnp.float32)
        self.posedirs = 0.01 * jax.random.normal(
            ks[2], (NUM_JOINTS * 9, V * 3), jnp.float32
        )
        self.J_regressor = jax.nn.softmax(
            jax.random.normal(ks[3], (J_TOTAL, V), jnp.float32), axis=-1
        )
        self.lbs_weights = jax.nn.softmax(
            4.0 * jax.random.normal(ks[4], (V, J_TOTAL), jnp.float32), axis=-1
        )
        self.faces_tensor = jax.random.randint(ks[5], (F, 3), 0, V, jnp.int32)
        # simple valid kinematic tree (parents[i] < i)
        self.parents = [-1] + [(i - 1) // 2 for i in range(1, J_TOTAL)]
        self.levels = build_levels(self.parents)

        hp = jax.lax.Precision.HIGHEST
        # Precontract joint regressor with the rest pose / shapedirs (removes one kernel).
        J_template = jnp.einsum('jv,vk->jk', self.J_regressor, self.v_template,
                                precision=hp)                                 # (J,3)
        J_shapedirs = jnp.einsum('jv,vkl->jkl', self.J_regressor, self.shapedirs,
                                 precision=hp)                                # (J,3,10)

        # ---- fused blendshape weight (K_PAD, N_PAD), lane-dense axis-major columns ----
        sd_t = jnp.transpose(self.shapedirs, (2, 1, 0)).reshape(NUM_BETAS, NV3)       # (10,3V)
        pd_t = jnp.transpose(self.posedirs.reshape(NUM_JOINTS * 9, V, 3),
                             (0, 2, 1)).reshape(NUM_JOINTS * 9, NV3)                  # (459,3V)
        jd = jnp.transpose(J_shapedirs, (2, 0, 1)).reshape(NUM_BETAS, NJ3)            # (10,J*3)
        W = jnp.zeros((K_PAD, N_PAD), jnp.float32)
        W = W.at[:NUM_BETAS, :NV3].set(sd_t)
        W = W.at[:NUM_BETAS, NV3:NV3 + NJ3].set(jd)
        W = W.at[NUM_BETAS:K_RAW, :NV3].set(pd_t)       # pose blendshapes don't touch joints

        # bias (v_template / J_template) folded into W as a two-row bf16 hi/lo split:
        # bias ~= bf16(bias) + bf16(bias - bf16(bias))  -> ~f32 accurate after f32 accumulate.
        bias = jnp.zeros((N_PAD,), jnp.float32)
        bias = bias.at[:NV3].set(self.v_template.T.reshape(NV3))
        bias = bias.at[NV3:NV3 + NJ3].set(J_template.reshape(NJ3))
        bias_hi = bias.astype(jnp.bfloat16).astype(jnp.float32)
        bias_lo = bias - bias_hi
        W = W.at[K_RAW].set(bias_hi)
        W = W.at[K_RAW + 1].set(bias_lo)
        self.blend_w = W.astype(jnp.bfloat16)           # bf16 storage (bandwidth-bound stage)

        # ---- transposed, joint-padded skinning weights: (J_PAD, V) ----
        wt = jnp.zeros((J_PAD, V), jnp.float32)
        self.lbs_w_t_pad = wt.at[:J_TOTAL].set(self.lbs_weights.T)

    def forward(self, root_orient=None, pose_body=None, pose_hand=None,
                betas=None, trans=None, dmpls=None):
        assert dmpls is None
        B = root_orient.shape[0]
        # flat_hand_mean=True and zero hand means -> hand pose used as-is
        full_pose = jnp.concatenate([root_orient, pose_body, pose_hand], axis=-1)  # (B, 156)

        rot_mats = batch_rodrigues(full_pose.reshape(-1, 3)).reshape(B, J_TOTAL, 3, 3)
        ident = jnp.eye(3, dtype=jnp.float32)
        pose_feature = (rot_mats[:, 1:] - ident).reshape(B, NUM_JOINTS * 9)

        # 1+2+3) fused: shape blendshapes + pose blendshapes + joint regression + bias (Pallas)
        x = jnp.zeros((B, K_PAD), jnp.float32)
        x = x.at[:, :NUM_BETAS].set(betas)
        x = x.at[:, NUM_BETAS:K_RAW].set(pose_feature)
        x = x.at[:, K_RAW:K_RAW + 2].set(1.0)           # activates the folded bias rows
        blend = fused_blendshapes(x, self.blend_w)                           # (B, N_PAD)
        v_posed_t = blend[:, :NV3].reshape(B, 3, V)                          # axis-major (B,3,V)
        joints = blend[:, NV3:NV3 + NJ3].reshape(B, J_TOTAL, 3)              # (B,J,3)

        # 4) rigid kinematic chain (plain JAX, level-wise batched 4x4 products)
        posed_joints, A = batch_rigid_transform(rot_mats, joints, self.parents, self.levels)

        # 5+6) LBS skinning + translation (Pallas, lane-dense transposed layout)
        # Fold trans into A's translation column (valid: LBS weights rows sum to 1,
        # padded joints carry zero weight), then group the 12 live entries as
        # [R col-x(3) | col-y(3) | col-z(3) | t(3)] for the (3,V) FMA epilogue.
        A_loc = A[:, :, :3, :]                                               # (B,J,3,4)
        A_loc = A_loc.at[:, :, :, 3].add(trans[:, None, :])
        A_loc = jnp.swapaxes(A_loc, -1, -2).reshape(B, J_TOTAL, 12)          # (B,J,12)
        A_pad = jnp.pad(A_loc, ((0, 0), (0, J_PAD - J_TOTAL), (0, 0)))       # (B,J_PAD,12)
        verts_t = lbs_skinning(self.lbs_w_t_pad, A_pad, v_posed_t)           # (B,3,V)
        verts = jnp.transpose(verts_t, (0, 2, 1))                            # final (B,V,3) here
        Jtr = posed_joints + trans[:, None, :]

        out = {
            'v': verts,
            'f': self.faces_tensor,
            'betas': betas,
            'Jtr': Jtr[:, : self.NUM_JOINTS + 1],   # use_vtx_selector=False path
            'pose_body': pose_body,
            'full_pose': full_pose,
            'pose_hand': pose_hand,                 # smplh branch: cat(left, right)
        }
        return Struct(**out)


# ---------------- pure-JAX reference (for correctness check) ----------------

def reference_lbs(model, root_orient, pose_body, pose_hand, betas, trans):
    B = betas.shape[0]
    hp = jax.lax.Precision.HIGHEST
    full_pose = jnp.concatenate([root_orient, pose_body, pose_hand], axis=-1)
    v_shaped = model.v_template[None] + jnp.einsum(
        'bl,mkl->bmk', betas, model.shapedirs, precision=hp)
    joints = jnp.einsum('jv,bvk->bjk', model.J_regressor, v_shaped, precision=hp)
    rot_mats = batch_rodrigues(full_pose.reshape(-1, 3)).reshape(B, J_TOTAL, 3, 3)
    pose_feature = (rot_mats[:, 1:] - jnp.eye(3, dtype=jnp.float32)).reshape(B, -1)
    v_posed = v_shaped + jnp.matmul(
        pose_feature, model.posedirs, precision=hp).reshape(B, V, 3)
    posed_joints, A = batch_rigid_transform(rot_mats, joints, model.parents, model.levels)
    T = jnp.einsum('vj,bjrc->bvrc', model.lbs_weights, A, precision=hp)
    v_homo = jnp.concatenate([v_posed, jnp.ones((B, V, 1), jnp.float32)], axis=-1)[..., None]
    verts = jnp.matmul(T, v_homo)[:, :, :3, 0] + trans[:, None, :]
    return verts, posed_joints + trans[:, None, :]


if __name__ == "__main__":
    key = jax.random.PRNGKey(0)
    kparams, kin = jax.random.split(key)
    model = BodyModel(kparams)

    B = 2
    ks = jax.random.split(kin, 5)
    root_orient = 0.2 * jax.random.normal(ks[0], (B, 3), jnp.float32)
    pose_body = 0.2 * jax.random.normal(ks[1], (B, NUM_BODY_JOINTS * 3), jnp.float32)
    pose_hand = 0.2 * jax.random.normal(ks[2], (B, 2 * NUM_HAND_JOINTS * 3), jnp.float32)
    betas = jax.random.normal(ks[3], (B, NUM_BETAS), jnp.float32)
    trans = 0.5 * jax.random.normal(ks[4], (B, 3), jnp.float32)

    out = model.forward(root_orient=root_orient, pose_body=pose_body,
                        pose_hand=pose_hand, betas=betas, trans=trans)
    jax.block_until_ready(out.v)
    jax.block_until_ready(out.Jtr)

    # sanity check vs pure-JAX f32 (HIGHEST precision) reference
    ref_v, ref_j = reference_lbs(model, root_orient, pose_body, pose_hand, betas, trans)
    assert out.v.shape == (B, V, 3)
    assert out.Jtr.shape == (B, J_TOTAL, 3)
    assert out.full_pose.shape == (B, J_TOTAL * 3)
    assert float(jnp.max(jnp.abs(out.v - ref_v))) < 5e-2
    assert float(jnp.max(jnp.abs(out.Jtr - ref_j))) < 2e-2

    print("KERNEL_OK")
</pallas_src>

<mosaic_0001>
module attributes {stable_mosaic.version = 11 : i64} {
  func.func @_blend_kernel(%arg0: i32, %arg1: memref<2x512xf32, #tpu.memory_space<vmem>>, %arg2: memref<512x512xbf16, #tpu.memory_space<vmem>>, %arg3: memref<2x512xf32, #tpu.memory_space<vmem>>) attributes {dimension_semantics = [#tpu.dimension_semantics<parallel>], iteration_bounds = array<i64: 2>, scalar_prefetch = 0 : i64, scratch_operands = 0 : i64, tpu.core_type = #tpu.core_type<tc>, window_params = [{pipeline_mode = #tpu.pipeline_mode<synchronous>, transform_indices = @transform_0, window_bounds = array<i64: 2, 512>}, {transform_indices = @transform_1, window_bounds = array<i64: 512, 512>}, {transform_indices = @transform_2, window_bounds = array<i64: 2, 512>}]} {
    %c0 = arith.constant 0 : index
    %c0_0 = arith.constant 0 : index
    %0 = vector.load %arg1[%c0, %c0_0] : memref<2x512xf32, #tpu.memory_space<vmem>>, vector<2x512xf32>
    %1 = arith.truncf %0 : vector<2x512xf32> to vector<2x512xbf16>
    %c0_1 = arith.constant 0 : index
    %c0_2 = arith.constant 0 : index
    %2 = vector.load %arg2[%c0_1, %c0_2] : memref<512x512xbf16, #tpu.memory_space<vmem>>, vector<512x512xbf16>
    %cst = arith.constant dense<0.000000e+00> : vector<2x512xf32>
    %3 = tpu.matmul %1, %2, %cst {dimension_numbers = #tpu.dot_dimension_numbers<[1], [0], [0], [1], [0, 0, 1, 1], [], []>} : vector<2x512xbf16>, vector<512x512xbf16>, vector<2x512xf32> -> vector<2x512xf32>
    %c0_3 = arith.constant 0 : index
    %c0_4 = arith.constant 0 : index
    %4 = vector.load %arg3[%c0_3, %c0_4] : memref<2x512xf32, #tpu.memory_space<vmem>>, vector<2x512xf32>
    tpu.vector_store %arg3[%c0_3, %c0_4], %3 {strides = array<i32>} : memref<2x512xf32, #tpu.memory_space<vmem>>, vector<2x512xf32>,
    return
  }
  func.func @transform_0(%arg0: i32) -> (i32, i32) {
    %c0_i32 = arith.constant 0 : i32
    %c0_i32_0 = arith.constant 0 : i32
    %c0_i32_1 = arith.constant 0 : i32
    return %c0_i32, %c0_i32_0 : i32, i32
  }
  func.func @transform_1(%arg0: i32) -> (i32, i32) {
    %c0_i32 = arith.constant 0 : i32
    %c0_i32_0 = arith.constant 0 : i32
    return %c0_i32, %arg0 : i32, i32
  }
  func.func @transform_2(%arg0: i32) -> (i32, i32) {
    %c0_i32 = arith.constant 0 : i32
    %c0_i32_0 = arith.constant 0 : i32
    return %c0_i32, %arg0 : i32, i32
  }
}

</mosaic_0001>

<llo_original>
// kernel: tpu_custom_call.1
$region0: #{tpu_custom_call.1}
  #allocation0 [shape = 'u32[]', space=smem, size = 0x4, offset = 0x4, fixed_abs, tag = 'smem constant byte address 0x4 - core index']
  #allocation1 [shape = 'u32[72,128]{1,0:T(1,128)}', space=vmem, size = 0x9000, scoped, tag = 'internal scratch']
  %s0 = inlined_call_operand.hbm [shape: f32[2,512], index: 0, kind: input, shape index: {}]
  %s1 = inlined_call_operand.hbm [shape: bf16[512,1024], index: 1, kind: input, shape index: {}]
  %s2 = inlined_call_operand.hbm [shape: f32[2,1024], index: 2, kind: output, shape index: {}]
  %s3 = sld [smem:[#allocation0]]
  $region49: #{tpu_custom_call.1} parent=0
    _
  %s5 = ssub.s32 1, %s3
  %s6 = scalar_select 0, %s5, %s3
  $region1: #{tpu_custom_call.1} parent=0
    #allocation2 [shape = 'u8[4096]{0}', space=vmem, size = 0x1000, scoped, tag = 'input window, operand 0, single buffered']
    #allocation3 [shape = 's32[2]{0}', space=sflag, size = 0x8, scoped, tag = 'scoped memory for tpu_custom_call.1']
    #allocation4 [shape = 's32[2]{0}', space=sflag, size = 0x8, scoped, tag = 'scoped memory for tpu_custom_call.1']
    #allocation5 [shape = 'u8[1048576]{0}', space=vmem, size = 0x100000, scoped, tag = 'input window, operand 1']
    #allocation6 [shape = 's32[2]{0}', space=sflag, size = 0x8, scoped, tag = 'scoped memory for tpu_custom_call.1']
    #allocation7 [shape = 'u8[8192]{0}', space=vmem, size = 0x2000, scoped, tag = 'output window, operand 0']
    %7 = vsyncpa [#allocation3], 0
    %8 = vsyncpa [#allocation6], 0
    %s9 = scalar_lea.sflag [#allocation6], 1
    %10 = vsyncpa %s9, 0
    %11 = vsyncpa [#allocation4], 0
    %s12 = scalar_lea.sflag [#allocation4], 1
    %13 = vsyncpa %s12, 0
    loop: start=0, step=1, limit=4
    $region2: #{tpu_custom_call.1} parent=1 // loop_pre_header
      _
    $region3: #{tpu_custom_call.1} parent=1 // loop_header
      %s15 = sphi 0, %s19
      %p16 = scmp.ge.s32.totalorder %s15, 4
      %s23 = sphi 0, %s23
      %s25 = sphi 0, %s23
      %s26 = sphi 0, %s25
      %s40 = sphi 0, %s26
      %s46 = sphi 0, %s48
      %s49 = sphi 0, %s46
      %s50 = sphi 0, %s49
      %s66 = sphi 0, %s50
      %s72 = sphi 0, %s74
      %s75 = sphi 0, %s72
      %s76 = sphi 0, %s75
      %s92 = sphi 0, %s76
    $region4: #{tpu_custom_call.1} parent=1 // loop_header_branch
      %18 = sbr.rel (%p16) target = $region8
    $region5: #{tpu_custom_call.1} parent=1 // loop_body
      %s20 = ssub.s32 %s15, 1
      %s21 = ssub.s32 %s15, 2
      %s22 = sadd.s32 %s15, 1
      %s24 = sadd.s32 %s23, 1
      %p27 = scmp.eq.s32.totalorder %s15, 1
      %p28 = scmp.ne.s32.totalorder %s23, %s25
      %p29 = scmp.eq.s32.totalorder %s15, 0
      %p30 = por %p28, %p29
      %p31 = scmp.ne.s32.totalorder %s23, %s25
      %p32 = scmp.eq.s32.totalorder %s20, 1
      %p33 = por %p31, %p32
      %p34 = scmp.ne.s32.totalorder %s25, %s26
      %p35 = scmp.eq.s32.totalorder %s20, 0
      %p36 = por %p34, %p35
      %p37 = scmp.ne.s32.totalorder %s25, %s26
      %p38 = scmp.eq.s32.totalorder %s21, 1
      %p39 = por %p37, %p38
      %p41 = scmp.ne.s32.totalorder %s26, %s40
      %p42 = scmp.eq.s32.totalorder %s21, 0
      %p43 = por %p41, %p42
      %s44 = ssub.s32 %s15, %s22
      %p45 = scmp.eq.s32.totalorder %s44, 0
      %s47 = sadd.s32 %s46, 1
      %s48 = scalar_select %p45, %s46, %s47
      %p51 = pneg %p45
      %p52 = scmp.eq.s32.totalorder %s15, 1
      %p53 = por %p51, %p52
      %p54 = scmp.ne.s32.totalorder %s46, %s49
      %p55 = scmp.eq.s32.totalorder %s15, 0
      %p56 = por %p54, %p55
      %p57 = scmp.ne.s32.totalorder %s46, %s49
      %p58 = scmp.eq.s32.totalorder %s20, 1
      %p59 = por %p57, %p58
      %p60 = scmp.ne.s32.totalorder %s49, %s50
      %p61 = scmp.eq.s32.totalorder %s20, 0
      %p62 = por %p60, %p61
      %p63 = scmp.ne.s32.totalorder %s49, %s50
      %p64 = scmp.eq.s32.totalorder %s21, 1
      %p65 = por %p63, %p64
      %p67 = scmp.ne.s32.totalorder %s50, %s66
      %p68 = scmp.eq.s32.totalorder %s21, 0
      %p69 = por %p67, %p68
      %s70 = ssub.s32 %s15, %s22
      %p71 = scmp.eq.s32.totalorder %s70, 0
      %s73 = sadd.s32 %s72, 1
      %s74 = scalar_select %p71, %s72, %s73
      %p77 = pneg %p71
      %p78 = scmp.eq.s32.totalorder %s15, 1
      %p79 = por %p77, %p78
      %p80 = scmp.ne.s32.totalorder %s72, %s75
      %p81 = scmp.eq.s32.totalorder %s15, 0
      %p82 = por %p80, %p81
      %p83 = scmp.ne.s32.totalorder %s72, %s75
      %p84 = scmp.eq.s32.totalorder %s20, 1
      %p85 = por %p83, %p84
      %p86 = scmp.ne.s32.totalorder %s75, %s76
      %p87 = scmp.eq.s32.totalorder %s20, 0
      %p88 = por %p86, %p87
      %p89 = scmp.ne.s32.totalorder %s75, %s76
      %p90 = scmp.eq.s32.totalorder %s21, 1
      %p91 = por %p89, %p90
      %p93 = scmp.ne.s32.totalorder %s76, %s92
      %p94 = scmp.eq.s32.totalorder %s21, 0
      %p95 = por %p93, %p94
      %p96 = scmp.le.s32.totalorder 1, %s15
      %p97 = scmp.lt.s32.totalorder %s15, 3
      %p98 = pnand %p96, %p97
      %p99 = pneg %p98
      // Predicated region
      $region9: #{tpu_custom_call.1} parent=5 // pred_check
        _
      $region10: #{tpu_custom_call.1} parent=5 // pred_check_branch
        %101 = sbr.rel (%p98) target = $region12
      $region11: #{tpu_custom_call.1} parent=5 // pred_region
        %s102 = ssub.s32 %s15, 1
        // Predicated region
        $region13: #{tpu_custom_call.1} parent=11 // pred_check
          %p103 = pneg %p36
        $region14: #{tpu_custom_call.1} parent=11 // pred_check_branch
          %105 = sbr.rel (%p103) target = $region16
        $region15: #{tpu_custom_call.1} parent=11 // pred_region
          %107 = vsyncadd [#allocation3], 0
          %s109 = sshll.u32 %s0, 4
          %s110 = int_to_ptr.hbm [resolvable:$true] %s109
          %s111 = sshll.u32 [#allocation2], 4
          %s112 = int_to_ptr.vmem [resolvable:$true] %s111
          %114 = dma.hbm_to_vmem [thread:$0]  %s110, 128, %s112, [#allocation3]
        $region16: #{tpu_custom_call.1} parent=11 // pred_fallthru
          _
      $region12: #{tpu_custom_call.1} parent=5 // pred_fallthru
        _
      %p115 = scmp.lt.s32.totalorder %s15, 2
      // Predicated region
      $region17: #{tpu_custom_call.1} parent=5 // pred_check
        %p116 = pneg %p115
      $region18: #{tpu_custom_call.1} parent=5 // pred_check_branch
        %118 = sbr.rel (%p116) target = $region20
      $region19: #{tpu_custom_call.1} parent=5 // pred_region
        // Predicated region
        $region21: #{tpu_custom_call.1} parent=19 // pred_check
          %p119 = pneg %p56
        $region22: #{tpu_custom_call.1} parent=19 // pred_check_branch
          %121 = sbr.rel (%p119) target = $region24
        $region23: #{tpu_custom_call.1} parent=19 // pred_region
          %s122 = sand.u32 %s46, 1
          %s123 = scalar_lea.sflag [#allocation6], %s122
          %s124 = sand.u32 %s46, 1
          %s125 = smul.addr %s124, 1024
          %s126 = scalar_lea.vmem [#allocation5], %s125
          %s127 = smul.u32 4, %s15
          %129 = vsyncadd %s123, 0
          %s130 = smul.addr %s127, 4
          %s131 = scalar_lea.hbm %s1, %s130
          %s132 = sshll.u32 %s131, 4
          %s133 = int_to_ptr.hbm [resolvable:$true] %s132
          %s134 = sshll.u32 %s126, 4
          %s135 = int_to_ptr.vmem [resolvable:$true] %s134
          %140 = dma.hbm_to_vmem [thread:$0]  %s133, 16384, %s135, %s123, 512, 256, 16
        $region24: #{tpu_custom_call.1} parent=19 // pred_fallthru
          _
      $region20: #{tpu_custom_call.1} parent=5 // pred_fallthru
        _
      %p141 = scmp.le.s32.totalorder 1, %s15
      %p142 = scmp.lt.s32.totalorder %s15, 3
      %p143 = pnand %p141, %p142
      %p144 = pneg %p143
      // Predicated region
      $region25: #{tpu_custom_call.1} parent=5 // pred_check
        _
      $region26: #{tpu_custom_call.1} parent=5 // pred_check_branch
        %146 = sbr.rel (%p143) target = $region28
      $region27: #{tpu_custom_call.1} parent=5 // pred_region
        %s147 = ssub.s32 %s15, 1
        // Predicated region
        $region29: #{tpu_custom_call.1} parent=27 // pred_check
          %p148 = pneg %p36
        $region30: #{tpu_custom_call.1} parent=27 // pred_check_branch
          %150 = sbr.rel (%p148) target = $region32
        $region31: #{tpu_custom_call.1} parent=27 // pred_region
          %152 = dma.done [#allocation3], 128
        $region32: #{tpu_custom_call.1} parent=27 // pred_fallthru
          _
        %s153 = sand.u32 %s49, 1
        %s154 = scalar_lea.sflag [#allocation6], %s153
        %s155 = sand.u32 %s49, 1
        %s156 = smul.addr %s155, 1024
        %s157 = scalar_lea.vmem [#allocation5], %s156
        // Predicated region
        $region33: #{tpu_custom_call.1} parent=27 // pred_check
          %p158 = pneg %p62
        $region34: #{tpu_custom_call.1} parent=27 // pred_check_branch
          %160 = sbr.rel (%p158) target = $region36
        $region35: #{tpu_custom_call.1} parent=27 // pred_region
          %162 = dma.done %s154, 16384
        $region36: #{tpu_custom_call.1} parent=27 // pred_fallthru
          _
        %p163 = pneg %p36
        %p164 = pneg %p33
        %s165 = sand.u32 %s49, 1
        %s166 = scalar_lea.sflag [#allocation6], %s165
        %s167 = sand.u32 %s49, 1
        %s168 = smul.addr %s167, 1024
        %s169 = scalar_lea.vmem [#allocation5], %s168
        %p170 = pneg %p62
        %p171 = pneg %p59
        %p172 = pneg %p88
        %p173 = pneg %p85
        %s174 = sand.u32 %s75, 1
        %s175 = scalar_lea.sflag [#allocation4], %s174
        %s176 = sand.u32 %s75, 1
        %s177 = smul.addr %s176, 8
        %s178 = scalar_lea.vmem [#allocation7], %s177
        %s179 = smul.u32 4, %s20
        %s180 = smul.u32 4, %s20
        %v181 = vld [vmem:[#allocation2] sm:$0xff]
        %183 = vst [vmem:[#allocation1] ss:$4 sm:$0xff] %v181
        %v184 = vld.sshfl [vmem:[#allocation1] sm:$0xff pattern:$0x73625140]
        %v185 = vld.sshfl [vmem:[#allocation1 + $0x8] sm:$0xff pattern:$0x73625140]
        %v186 = vld.sshfl [vmem:[#allocation1 + $0x10] sm:$0xff pattern:$0x73625140]
        %v187 = vld.sshfl [vmem:[#allocation1 + $0x18] sm:$0xff pattern:$0x73625140]
        %v192 = vpack.c.bf16 %v184, %v184
        %v193 = vpack.c.bf16 %v185, %v185
        %v194 = vpack.c.bf16 %v186, %v186
        %v195 = vpack.c.bf16 %v187, %v187
        %v196 = vld [vmem:[%s157] sm:$0xff]
        %v197 = vld [vmem:[%s157 + $0x8] sm:$0xff]
        %v198 = vld [vmem:[%s157 + $0x10] sm:$0xff]
        %v199 = vld [vmem:[%s157 + $0x18] sm:$0xff]
        %v200 = vld [vmem:[%s157 + $0x20] sm:$0xff]
        %v201 = vld [vmem:[%s157 + $0x28] sm:$0xff]
        %v202 = vld [vmem:[%s157 + $0x30] sm:$0xff]
        %v203 = vld [vmem:[%s157 + $0x38] sm:$0xff]
        %v204 = vld [vmem:[%s157 + $0x40] sm:$0xff]
        %v205 = vld [vmem:[%s157 + $0x48] sm:$0xff]
        %v206 = vld [vmem:[%s157 + $0x50] sm:$0xff]
        %v207 = vld [vmem:[%s157 + $0x58] sm:$0xff]
        %v208 = vld [vmem:[%s157 + $0x60] sm:$0xff]
        %v209 = vld [vmem:[%s157 + $0x68] sm:$0xff]
        %v210 = vld [vmem:[%s157 + $0x70] sm:$0xff]
        %v211 = vld [vmem:[%s157 + $0x78] sm:$0xff]
        %v212 = vld [vmem:[%s157 + $0x80] sm:$0xff]
        %v213 = vld [vmem:[%s157 + $0x88] sm:$0xff]
        %v214 = vld [vmem:[%s157 + $0x90] sm:$0xff]
        %v215 = vld [vmem:[%s157 + $0x98] sm:$0xff]
        %v216 = vld [vmem:[%s157 + $0xa0] sm:$0xff]
        %v217 = vld [vmem:[%s157 + $0xa8] sm:$0xff]
        %v218 = vld [vmem:[%s157 + $0xb0] sm:$0xff]
        %v219 = vld [vmem:[%s157 + $0xb8] sm:$0xff]
        %v220 = vld [vmem:[%s157 + $0xc0] sm:$0xff]
        %v221 = vld [vmem:[%s157 + $0xc8] sm:$0xff]
        %v222 = vld [vmem:[%s157 + $0xd0] sm:$0xff]
        %v223 = vld [vmem:[%s157 + $0xd8] sm:$0xff]
        %v224 = vld [vmem:[%s157 + $0xe0] sm:$0xff]
        %v225 = vld [vmem:[%s157 + $0xe8] sm:$0xff]
        %v226 = vld [vmem:[%s157 + $0xf0] sm:$0xff]
        %v227 = vld [vmem:[%s157 + $0xf8] sm:$0xff]
        %v228 = vld [vmem:[%s157 + $0x100] sm:$0xff]
        %v229 = vld [vmem:[%s157 + $0x108] sm:$0xff]
        %v230 = vld [vmem:[%s157 + $0x110] sm:$0xff]
        %v231 = vld [vmem:[%s157 + $0x118] sm:$0xff]
        %v232 = vld [vmem:[%s157 + $0x120] sm:$0xff]
        %v233 = vld [vmem:[%s157 + $0x128] sm:$0xff]
        %v234 = vld [vmem:[%s157 + $0x130] sm:$0xff]
        %v235 = vld [vmem:[%s157 + $0x138] sm:$0xff]
        %v236 = vld [vmem:[%s157 + $0x140] sm:$0xff]
        %v237 = vld [vmem:[%s157 + $0x148] sm:$0xff]
        %v238 = vld [vmem:[%s157 + $0x150] sm:$0xff]
        %v239 = vld [vmem:[%s157 + $0x158] sm:$0xff]
        %v240 = vld [vmem:[%s157 + $0x160] sm:$0xff]
        %v241 = vld [vmem:[%s157 + $0x168] sm:$0xff]
        %v242 = vld [vmem:[%s157 + $0x170] sm:$0xff]
        %v243 = vld [vmem:[%s157 + $0x178] sm:$0xff]
        %v244 = vld [vmem:[%s157 + $0x180] sm:$0xff]
        %v245 = vld [vmem:[%s157 + $0x188] sm:$0xff]
        %v246 = vld [vmem:[%s157 + $0x190] sm:$0xff]
        %v247 = vld [vmem:[%s157 + $0x198] sm:$0xff]
        %v248 = vld [vmem:[%s157 + $0x1a0] sm:$0xff]
        %v249 = vld [vmem:[%s157 + $0x1a8] sm:$0xff]
        %v250 = vld [vmem:[%s157 + $0x1b0] sm:$0xff]
        %v251 = vld [vmem:[%s157 + $0x1b8] sm:$0xff]
        %v252 = vld [vmem:[%s157 + $0x1c0] sm:$0xff]
        %v253 = vld [vmem:[%s157 + $0x1c8] sm:$0xff]
        %v254 = vld [vmem:[%s157 + $0x1d0] sm:$0xff]
        %v255 = vld [vmem:[%s157 + $0x1d8] sm:$0xff]
        %v256 = vld [vmem:[%s157 + $0x1e0] sm:$0xff]
        %v257 = vld [vmem:[%s157 + $0x1e8] sm:$0xff]
        %v258 = vld [vmem:[%s157 + $0x1f0] sm:$0xff]
        %v259 = vld [vmem:[%s157 + $0x1f8] sm:$0xff]
        %v260 = vld [vmem:[%s157 + $0x200] sm:$0xff]
        %v261 = vld [vmem:[%s157 + $0x208] sm:$0xff]
        %v262 = vld [vmem:[%s157 + $0x210] sm:$0xff]
        %v263 = vld [vmem:[%s157 + $0x218] sm:$0xff]
        %v264 = vld [vmem:[%s157 + $0x220] sm:$0xff]
        %v265 = vld [vmem:[%s157 + $0x228] sm:$0xff]
        %v266 = vld [vmem:[%s157 + $0x230] sm:$0xff]
        %v267 = vld [vmem:[%s157 + $0x238] sm:$0xff]
        %v268 = vld [vmem:[%s157 + $0x240] sm:$0xff]
        %v269 = vld [vmem:[%s157 + $0x248] sm:$0xff]
        %v270 = vld [vmem:[%s157 + $0x250] sm:$0xff]
        %v271 = vld [vmem:[%s157 + $0x258] sm:$0xff]
        %v272 = vld [vmem:[%s157 + $0x260] sm:$0xff]
        %v273 = vld [vmem:[%s157 + $0x268] sm:$0xff]
        %v274 = vld [vmem:[%s157 + $0x270] sm:$0xff]
        %v275 = vld [vmem:[%s157 + $0x278] sm:$0xff]
        %v276 = vld [vmem:[%s157 + $0x280] sm:$0xff]
        %v277 = vld [vmem:[%s157 + $0x288] sm:$0xff]
        %v278 = vld [vmem:[%s157 + $0x290] sm:$0xff]
        %v279 = vld [vmem:[%s157 + $0x298] sm:$0xff]
        %v280 = vld [vmem:[%s157 + $0x2a0] sm:$0xff]
        %v281 = vld [vmem:[%s157 + $0x2a8] sm:$0xff]
        %v282 = vld [vmem:[%s157 + $0x2b0] sm:$0xff]
        %v283 = vld [vmem:[%s157 + $0x2b8] sm:$0xff]
        %v284 = vld [vmem:[%s157 + $0x2c0] sm:$0xff]
        %v285 = vld [vmem:[%s157 + $0x2c8] sm:$0xff]
        %v286 = vld [vmem:[%s157 + $0x2d0] sm:$0xff]
        %v287 = vld [vmem:[%s157 + $0x2d8] sm:$0xff]
        %v288 = vld [vmem:[%s157 + $0x2e0] sm:$0xff]
        %v289 = vld [vmem:[%s157 + $0x2e8] sm:$0xff]
        %v290 = vld [vmem:[%s157 + $0x2f0] sm:$0xff]
        %v291 = vld [vmem:[%s157 + $0x2f8] sm:$0xff]
        %v292 = vld [vmem:[%s157 + $0x300] sm:$0xff]
        %v293 = vld [vmem:[%s157 + $0x308] sm:$0xff]
        %v294 = vld [vmem:[%s157 + $0x310] sm:$0xff]
        %v295 = vld [vmem:[%s157 + $0x318] sm:$0xff]
        %v296 = vld [vmem:[%s157 + $0x320] sm:$0xff]
        %v297 = vld [vmem:[%s157 + $0x328] sm:$0xff]
        %v298 = vld [vmem:[%s157 + $0x330] sm:$0xff]
        %v299 = vld [vmem:[%s157 + $0x338] sm:$0xff]
        %v300 = vld [vmem:[%s157 + $0x340] sm:$0xff]
        %v301 = vld [vmem:[%s157 + $0x348] sm:$0xff]
        %v302 = vld [vmem:[%s157 + $0x350] sm:$0xff]
        %v303 = vld [vmem:[%s157 + $0x358] sm:$0xff]
        %v304 = vld [vmem:[%s157 + $0x360] sm:$0xff]
        %v305 = vld [vmem:[%s157 + $0x368] sm:$0xff]
        %v306 = vld [vmem:[%s157 + $0x370] sm:$0xff]
        %v307 = vld [vmem:[%s157 + $0x378] sm:$0xff]
        %v308 = vld [vmem:[%s157 + $0x380] sm:$0xff]
        %v309 = vld [vmem:[%s157 + $0x388] sm:$0xff]
        %v310 = vld [vmem:[%s157 + $0x390] sm:$0xff]
        %v311 = vld [vmem:[%s157 + $0x398] sm:$0xff]
        %v312 = vld [vmem:[%s157 + $0x3a0] sm:$0xff]
        %v313 = vld [vmem:[%s157 + $0x3a8] sm:$0xff]
        %v314 = vld [vmem:[%s157 + $0x3b0] sm:$0xff]
        %v315 = vld [vmem:[%s157 + $0x3b8] sm:$0xff]
        %v316 = vld [vmem:[%s157 + $0x3c0] sm:$0xff]
        %v317 = vld [vmem:[%s157 + $0x3c8] sm:$0xff]
        %v318 = vld [vmem:[%s157 + $0x3d0] sm:$0xff]
        %v319 = vld [vmem:[%s157 + $0x3d8] sm:$0xff]
        %v320 = vld [vmem:[%s157 + $0x3e0] sm:$0xff]
        %v321 = vld [vmem:[%s157 + $0x3e8] sm:$0xff]
        %v322 = vld [vmem:[%s157 + $0x3f0] sm:$0xff]
        %v323 = vld [vmem:[%s157 + $0x3f8] sm:$0xff]
        %v452 = vunpack.c.l.b16 %v196
        %v453 = vunpack.c.h.b16 %v196
        %v454 = vunpack.c.l.b16 %v197
        %v455 = vunpack.c.h.b16 %v197
        %v456 = vunpack.c.l.b16 %v198
        %v457 = vunpack.c.h.b16 %v198
        %v458 = vunpack.c.l.b16 %v199
        %v459 = vunpack.c.h.b16 %v199
        %v460 = vunpack.c.l.b16 %v200
        %v461 = vunpack.c.h.b16 %v200
        %v462 = vunpack.c.l.b16 %v201
        %v463 = vunpack.c.h.b16 %v201
        %v464 = vunpack.c.l.b16 %v202
        %v465 = vunpack.c.h.b16 %v202
        %v466 = vunpack.c.l.b16 %v203
        %v467 = vunpack.c.h.b16 %v203
        %v468 = vunpack.c.l.b16 %v204
        %v469 = vunpack.c.h.b16 %v204
        %v470 = vunpack.c.l.b16 %v205
        %v471 = vunpack.c.h.b16 %v205
        %v472 = vunpack.c.l.b16 %v206
        %v473 = vunpack.c.h.b16 %v206
        %v474 = vunpack.c.l.b16 %v207
        %v475 = vunpack.c.h.b16 %v207
        %v476 = vunpack.c.l.b16 %v208
        %v477 = vunpack.c.h.b16 %v208
        %v478 = vunpack.c.l.b16 %v209
        %v479 = vunpack.c.h.b16 %v209
        %v480 = vunpack.c.l.b16 %v210
        %v481 = vunpack.c.h.b16 %v210
        %v482 = vunpack.c.l.b16 %v211
        %v483 = vunpack.c.h.b16 %v211
        %v484 = vunpack.c.l.b16 %v212
        %v485 = vunpack.c.h.b16 %v212
        %v486 = vunpack.c.l.b16 %v213
        %v487 = vunpack.c.h.b16 %v213
        %v488 = vunpack.c.l.b16 %v214
        %v489 = vunpack.c.h.b16 %v214
        %v490 = vunpack.c.l.b16 %v215
        %v491 = vunpack.c.h.b16 %v215
        %v492 = vunpack.c.l.b16 %v216
        %v493 = vunpack.c.h.b16 %v216
        %v494 = vunpack.c.l.b16 %v217
        %v495 = vunpack.c.h.b16 %v217
        %v496 = vunpack.c.l.b16 %v218
        %v497 = vunpack.c.h.b16 %v218
        %v498 = vunpack.c.l.b16 %v219
        %v499 = vunpack.c.h.b16 %v219
        %v500 = vunpack.c.l.b16 %v220
        %v501 = vunpack.c.h.b16 %v220
        %v502 = vunpack.c.l.b16 %v221
        %v503 = vunpack.c.h.b16 %v221
        %v504 = vunpack.c.l.b16 %v222
        %v505 = vunpack.c.h.b16 %v222
        %v506 = vunpack.c.l.b16 %v223
        %v507 = vunpack.c.h.b16 %v223
        %v508 = vunpack.c.l.b16 %v224
        %v509 = vunpack.c.h.b16 %v224
        %v510 = vunpack.c.l.b16 %v225
        %v511 = vunpack.c.h.b16 %v225
        %v512 = vunpack.c.l.b16 %v226
        %v513 = vunpack.c.h.b16 %v226
        %v514 = vunpack.c.l.b16 %v227
        %v515 = vunpack.c.h.b16 %v227
        %v516 = vunpack.c.l.b16 %v228
        %v517 = vunpack.c.h.b16 %v228
        %v518 = vunpack.c.l.b16 %v229
        %v519 = vunpack.c.h.b16 %v229
        %v520 = vunpack.c.l.b16 %v230
        %v521 = vunpack.c.h.b16 %v230
        %v522 = vunpack.c.l.b16 %v231
        %v523 = vunpack.c.h.b16 %v231
        %v524 = vunpack.c.l.b16 %v232
        %v525 = vunpack.c.h.b16 %v232
        %v526 = vunpack.c.l.b16 %v233
        %v527 = vunpack.c.h.b16 %v233
        %v528 = vunpack.c.l.b16 %v234
        %v529 = vunpack.c.h.b16 %v234
        %v530 = vunpack.c.l.b16 %v235
        %v531 = vunpack.c.h.b16 %v235
        %v532 = vunpack.c.l.b16 %v236
        %v533 = vunpack.c.h.b16 %v236
        %v534 = vunpack.c.l.b16 %v237
        %v535 = vunpack.c.h.b16 %v237
        %v536 = vunpack.c.l.b16 %v238
        %v537 = vunpack.c.h.b16 %v238
        %v538 = vunpack.c.l.b16 %v239
        %v539 = vunpack.c.h.b16 %v239
        %v540 = vunpack.c.l.b16 %v240
        %v541 = vunpack.c.h.b16 %v240
        %v542 = vunpack.c.l.b16 %v241
        %v543 = vunpack.c.h.b16 %v241
        %v544 = vunpack.c.l.b16 %v242
        %v545 = vunpack.c.h.b16 %v242
        %v546 = vunpack.c.l.b16 %v243
        %v547 = vunpack.c.h.b16 %v243
        %v548 = vunpack.c.l.b16 %v244
        %v549 = vunpack.c.h.b16 %v244
        %v550 = vunpack.c.l.b16 %v245
        %v551 = vunpack.c.h.b16 %v245
        %v552 = vunpack.c.l.b16 %v246
        %v553 = vunpack.c.h.b16 %v246
        %v554 = vunpack.c.l.b16 %v247
        %v555 = vunpack.c.h.b16 %v247
        %v556 = vunpack.c.l.b16 %v248
        %v557 = vunpack.c.h.b16 %v248
        %v558 = vunpack.c.l.b16 %v249
        %v559 = vunpack.c.h.b16 %v249
        %v560 = vunpack.c.l.b16 %v250
        %v561 = vunpack.c.h.b16 %v250
        %v562 = vunpack.c.l.b16 %v251
        %v563 = vunpack.c.h.b16 %v251
        %v564 = vunpack.c.l.b16 %v252
        %v565 = vunpack.c.h.b16 %v252
        %v566 = vunpack.c.l.b16 %v253
        %v567 = vunpack.c.h.b16 %v253
        %v568 = vunpack.c.l.b16 %v254
        %v569 = vunpack.c.h.b16 %v254
        %v570 = vunpack.c.l.b16 %v255
        %v571 = vunpack.c.h.b16 %v255
        %v572 = vunpack.c.l.b16 %v256
        %v573 = vunpack.c.h.b16 %v256
        %v574 = vunpack.c.l.b16 %v257
        %v575 = vunpack.c.h.b16 %v257
        %v576 = vunpack.c.l.b16 %v258
        %v577 = vunpack.c.h.b16 %v258
        %v578 = vunpack.c.l.b16 %v259
        %v579 = vunpack.c.h.b16 %v259
        %v580 = vunpack.c.l.b16 %v260
        %v581 = vunpack.c.h.b16 %v260
        %v582 = vunpack.c.l.b16 %v261
        %v583 = vunpack.c.h.b16 %v261
        %v584 = vunpack.c.l.b16 %v262
        %v585 = vunpack.c.h.b16 %v262
        %v586 = vunpack.c.l.b16 %v263
        %v587 = vunpack.c.h.b16 %v263
        %v588 = vunpack.c.l.b16 %v264
        %v589 = vunpack.c.h.b16 %v264
        %v590 = vunpack.c.l.b16 %v265
        %v591 = vunpack.c.h.b16 %v265
        %v592 = vunpack.c.l.b16 %v266
        %v593 = vunpack.c.h.b16 %v266
        %v594 = vunpack.c.l.b16 %v267
        %v595 = vunpack.c.h.b16 %v267
        %v596 = vunpack.c.l.b16 %v268
        %v597 = vunpack.c.h.b16 %v268
        %v598 = vunpack.c.l.b16 %v269
        %v599 = vunpack.c.h.b16 %v269
        %v600 = vunpack.c.l.b16 %v270
        %v601 = vunpack.c.h.b16 %v270
        %v602 = vunpack.c.l.b16 %v271
        %v603 = vunpack.c.h.b16 %v271
        %v604 = vunpack.c.l.b16 %v272
        %v605 = vunpack.c.h.b16 %v272
        %v606 = vunpack.c.l.b16 %v273
        %v607 = vunpack.c.h.b16 %v273
        %v608 = vunpack.c.l.b16 %v274
        %v609 = vunpack.c.h.b16 %v274
        %v610 = vunpack.c.l.b16 %v275
        %v611 = vunpack.c.h.b16 %v275
        %v612 = vunpack.c.l.b16 %v276
        %v613 = vunpack.c.h.b16 %v276
        %v614 = vunpack.c.l.b16 %v277
        %v615 = vunpack.c.h.b16 %v277
        %v616 = vunpack.c.l.b16 %v278
        %v617 = vunpack.c.h.b16 %v278
        %v618 = vunpack.c.l.b16 %v279
        %v619 = vunpack.c.h.b16 %v279
        %v620 = vunpack.c.l.b16 %v280
        %v621 = vunpack.c.h.b16 %v280
        %v622 = vunpack.c.l.b16 %v281
        %v623 = vunpack.c.h.b16 %v281
        %v624 = vunpack.c.l.b16 %v282
        %v625 = vunpack.c.h.b16 %v282
        %v626 = vunpack.c.l.b16 %v283
        %v627 = vunpack.c.h.b16 %v283
        %v628 = vunpack.c.l.b16 %v284
        %v629 = vunpack.c.h.b16 %v284
        %v630 = vunpack.c.l.b16 %v285
        %v631 = vunpack.c.h.b16 %v285
        %v632 = vunpack.c.l.b16 %v286
        %v633 = vunpack.c.h.b16 %v286
        %v634 = vunpack.c.l.b16 %v287
        %v635 = vunpack.c.h.b16 %v287
        %v636 = vunpack.c.l.b16 %v288
        %v637 = vunpack.c.h.b16 %v288
        %v638 = vunpack.c.l.b16 %v289
        %v639 = vunpack.c.h.b16 %v289
        %v640 = vunpack.c.l.b16 %v290
        %v641 = vunpack.c.h.b16 %v290
        %v642 = vunpack.c.l.b16 %v291
        %v643 = vunpack.c.h.b16 %v291
        %v644 = vunpack.c.l.b16 %v292
        %v645 = vunpack.c.h.b16 %v292
        %v646 = vunpack.c.l.b16 %v293
        %v647 = vunpack.c.h.b16 %v293
        %v648 = vunpack.c.l.b16 %v294
        %v649 = vunpack.c.h.b16 %v294
        %v650 = vunpack.c.l.b16 %v295
        %v651 = vunpack.c.h.b16 %v295
        %v652 = vunpack.c.l.b16 %v296
        %v653 = vunpack.c.h.b16 %v296
        %v654 = vunpack.c.l.b16 %v297
        %v655 = vunpack.c.h.b16 %v297
        %v656 = vunpack.c.l.b16 %v298
        %v657 = vunpack.c.h.b16 %v298
        %v658 = vunpack.c.l.b16 %v299
        %v659 = vunpack.c.h.b16 %v299
        %v660 = vunpack.c.l.b16 %v300
        %v661 = vunpack.c.h.b16 %v300
        %v662 = vunpack.c.l.b16 %v301
        %v663 = vunpack.c.h.b16 %v301
        %v664 = vunpack.c.l.b16 %v302
        %v665 = vunpack.c.h.b16 %v302
        %v666 = vunpack.c.l.b16 %v303
        %v667 = vunpack.c.h.b16 %v303
        %v668 = vunpack.c.l.b16 %v304
        %v669 = vunpack.c.h.b16 %v304
        %v670 = vunpack.c.l.b16 %v305
        %v671 = vunpack.c.h.b16 %v305
        %v672 = vunpack.c.l.b16 %v306
        %v673 = vunpack.c.h.b16 %v306
        %v674 = vunpack.c.l.b16 %v307
        %v675 = vunpack.c.h.b16 %v307
        %v676 = vunpack.c.l.b16 %v308
        %v677 = vunpack.c.h.b16 %v308
        %v678 = vunpack.c.l.b16 %v309
        %v679 = vunpack.c.h.b16 %v309
        %v680 = vunpack.c.l.b16 %v310
        %v681 = vunpack.c.h.b16 %v310
        %v682 = vunpack.c.l.b16 %v311
        %v683 = vunpack.c.h.b16 %v311
        %v684 = vunpack.c.l.b16 %v312
        %v685 = vunpack.c.h.b16 %v312
        %v686 = vunpack.c.l.b16 %v313
        %v687 = vunpack.c.h.b16 %v313
        %v688 = vunpack.c.l.b16 %v314
        %v689 = vunpack.c.h.b16 %v314
        %v690 = vunpack.c.l.b16 %v315
        %v691 = vunpack.c.h.b16 %v315
        %v692 = vunpack.c.l.b16 %v316
        %v693 = vunpack.c.h.b16 %v316
        %v694 = vunpack.c.l.b16 %v317
        %v695 = vunpack.c.h.b16 %v317
        %v696 = vunpack.c.l.b16 %v318
        %v697 = vunpack.c.h.b16 %v318
        %v698 = vunpack.c.l.b16 %v319
        %v699 = vunpack.c.h.b16 %v319
        %v700 = vunpack.c.l.b16 %v320
        %v701 = vunpack.c.h.b16 %v320
        %v702 = vunpack.c.l.b16 %v321
        %v703 = vunpack.c.h.b16 %v321
        %v704 = vunpack.c.l.b16 %v322
        %v705 = vunpack.c.h.b16 %v322
        %v706 = vunpack.c.l.b16 %v323
        %v707 = vunpack.c.h.b16 %v323
        %v708 = vpack.c.b16 %v456, %v452
        %v709 = vpack.c.b16 %v457, %v453
        %v710 = vpack.c.b16 %v458, %v454
        %v711 = vpack.c.b16 %v459, %v455
        %v712 = vpack.c.b16 %v464, %v460
        %v713 = vpack.c.b16 %v465, %v461
        %v714 = vpack.c.b16 %v466, %v462
        %v715 = vpack.c.b16 %v467, %v463
        %v716 = vpack.c.b16 %v472, %v468
        %v717 = vpack.c.b16 %v473, %v469
        %v718 = vpack.c.b16 %v474, %v470
        %v719 = vpack.c.b16 %v475, %v471
        %v720 = vpack.c.b16 %v480, %v476
        %v721 = vpack.c.b16 %v481, %v477
        %v722 = vpack.c.b16 %v482, %v478
        %v723 = vpack.c.b16 %v483, %v479
        %v724 = vpack.c.b16 %v488, %v484
        %v725 = vpack.c.b16 %v489, %v485
        %v726 = vpack.c.b16 %v490, %v486
        %v727 = vpack.c.b16 %v491, %v487
        %v728 = vpack.c.b16 %v496, %v492
        %v729 = vpack.c.b16 %v497, %v493
        %v730 = vpack.c.b16 %v498, %v494
        %v731 = vpack.c.b16 %v499, %v495
        %v732 = vpack.c.b16 %v504, %v500
        %v733 = vpack.c.b16 %v505, %v501
        %v734 = vpack.c.b16 %v506, %v502
        %v735 = vpack.c.b16 %v507, %v503
        %v736 = vpack.c.b16 %v512, %v508
        %v737 = vpack.c.b16 %v513, %v509
        %v738 = vpack.c.b16 %v514, %v510
        %v739 = vpack.c.b16 %v515, %v511
        %v740 = vpack.c.b16 %v520, %v516
        %v741 = vpack.c.b16 %v521, %v517
        %v742 = vpack.c.b16 %v522, %v518
        %v743 = vpack.c.b16 %v523, %v519
        %v744 = vpack.c.b16 %v528, %v524
        %v745 = vpack.c.b16 %v529, %v525
        %v746 = vpack.c.b16 %v530, %v526
        %v747 = vpack.c.b16 %v531, %v527
        %v748 = vpack.c.b16 %v536, %v532
        %v749 = vpack.c.b16 %v537, %v533
        %v750 = vpack.c.b16 %v538, %v534
        %v751 = vpack.c.b16 %v539, %v535
        %v752 = vpack.c.b16 %v544, %v540
        %v753 = vpack.c.b16 %v545, %v541
        %v754 = vpack.c.b16 %v546, %v542
        %v755 = vpack.c.b16 %v547, %v543
        %v756 = vpack.c.b16 %v552, %v548
        %v757 = vpack.c.b16 %v553, %v549
        %v758 = vpack.c.b16 %v554, %v550
        %v759 = vpack.c.b16 %v555, %v551
        %v760 = vpack.c.b16 %v560, %v556
        %v761 = vpack.c.b16 %v561, %v557
        %v762 = vpack.c.b16 %v562, %v558
        %v763 = vpack.c.b16 %v563, %v559
        %v764 = vpack.c.b16 %v568, %v564
        %v765 = vpack.c.b16 %v569, %v565
        %v766 = vpack.c.b16 %v570, %v566
        %v767 = vpack.c.b16 %v571, %v567
        %v768 = vpack.c.b16 %v576, %v572
        %v769 = vpack.c.b16 %v577, %v573
        %v770 = vpack.c.b16 %v578, %v574
        %v771 = vpack.c.b16 %v579, %v575
        %v772 = vpack.c.b16 %v584, %v580
        %v773 = vpack.c.b16 %v585, %v581
        %v774 = vpack.c.b16 %v586, %v582
        %v775 = vpack.c.b16 %v587, %v583
        %v776 = vpack.c.b16 %v592, %v588
        %v777 = vpack.c.b16 %v593, %v589
        %v778 = vpack.c.b16 %v594, %v590
        %v779 = vpack.c.b16 %v595, %v591
        %v780 = vpack.c.b16 %v600, %v596
        %v781 = vpack.c.b16 %v601, %v597
        %v782 = vpack.c.b16 %v602, %v598
        %v783 = vpack.c.b16 %v603, %v599
        %v784 = vpack.c.b16 %v608, %v604
        %v785 = vpack.c.b16 %v609, %v605
        %v786 = vpack.c.b16 %v610, %v606
        %v787 = vpack.c.b16 %v611, %v607
        %v788 = vpack.c.b16 %v616, %v612
        %v789 = vpack.c.b16 %v617, %v613
        %v790 = vpack.c.b16 %v618, %v614
        %v791 = vpack.c.b16 %v619, %v615
        %v792 = vpack.c.b16 %v624, %v620
        %v793 = vpack.c.b16 %v625, %v621
        %v794 = vpack.c.b16 %v626, %v622
        %v795 = vpack.c.b16 %v627, %v623
        %v796 = vpack.c.b16 %v632, %v628
        %v797 = vpack.c.b16 %v633, %v629
        %v798 = vpack.c.b16 %v634, %v630
        %v799 = vpack.c.b16 %v635, %v631
        %v800 = vpack.c.b16 %v640, %v636
        %v801 = vpack.c.b16 %v641, %v637
        %v802 = vpack.c.b16 %v642, %v638
        %v803 = vpack.c.b16 %v643, %v639
        %v804 = vpack.c.b16 %v648, %v644
        %v805 = vpack.c.b16 %v649, %v645
        %v806 = vpack.c.b16 %v650, %v646
        %v807 = vpack.c.b16 %v651, %v647
        %v808 = vpack.c.b16 %v656, %v652
        %v809 = vpack.c.b16 %v657, %v653
        %v810 = vpack.c.b16 %v658, %v654
        %v811 = vpack.c.b16 %v659, %v655
        %v812 = vpack.c.b16 %v664, %v660
        %v813 = vpack.c.b16 %v665, %v661
        %v814 = vpack.c.b16 %v666, %v662
        %v815 = vpack.c.b16 %v667, %v663
        %v816 = vpack.c.b16 %v672, %v668
        %v817 = vpack.c.b16 %v673, %v669
        %v818 = vpack.c.b16 %v674, %v670
        %v819 = vpack.c.b16 %v675, %v671
        %v820 = vpack.c.b16 %v680, %v676
        %v821 = vpack.c.b16 %v681, %v677
        %v822 = vpack.c.b16 %v682, %v678
        %v823 = vpack.c.b16 %v683, %v679
        %v824 = vpack.c.b16 %v688, %v684
        %v825 = vpack.c.b16 %v689, %v685
        %v826 = vpack.c.b16 %v690, %v686
        %v827 = vpack.c.b16 %v691, %v687
        %v828 = vpack.c.b16 %v696, %v692
        %v829 = vpack.c.b16 %v697, %v693
        %v830 = vpack.c.b16 %v698, %v694
        %v831 = vpack.c.b16 %v699, %v695
        %v832 = vpack.c.b16 %v704, %v700
        %v833 = vpack.c.b16 %v705, %v701
        %v834 = vpack.c.b16 %v706, %v702
        %v835 = vpack.c.b16 %v707, %v703
        %964 = vmatpush.bf16.msra.mxu0 %v736
        %965 = vmatpush.bf16.msra.mxu0 %v732
        %966 = vmatpush.bf16.msra.mxu0 %v728
        %967 = vmatpush.bf16.msra.mxu0 %v724
        %968 = vmatpush.bf16.msra.mxu0 %v720
        %969 = vmatpush.bf16.msra.mxu0 %v716
        %970 = vmatpush.bf16.msra.mxu0 %v712
        %971 = vmatpush.bf16.msra.mxu0 %v708
        %972 = vmatmul.bf16.gmra.mxu0 %v192
        %v973 = vpop.f32.mrf.mxu0
        %v974 = vadd.f32 0.0, %v973
        %v975 = vpop.f32.mrf.mxu0
        %976 = vdwg.mxu0
        %977 = vmatpush.bf16.msra.mxu0 %v768
        %978 = vmatpush.bf16.msra.mxu0 %v764
        %979 = vmatpush.bf16.msra.mxu0 %v760
        %980 = vmatpush.bf16.msra.mxu0 %v756
        %981 = vmatpush.bf16.msra.mxu0 %v752
        %982 = vmatpush.bf16.msra.mxu0 %v748
        %983 = vmatpush.bf16.msra.mxu0 %v744
        %984 = vmatpush.bf16.msra.mxu0 %v740
        %985 = vmatmul.bf16.gmra.mxu0 %v193
        %v986 = vpop.f32.mrf.mxu0
        %v987 = vadd.f32 %v974, %v986
        %v988 = vpop.f32.mrf.mxu0
        %989 = vdwg.mxu0
        %990 = vmatpush.bf16.msra.mxu0 %v800
        %991 = vmatpush.bf16.msra.mxu0 %v796
        %992 = vmatpush.bf16.msra.mxu0 %v792
        %993 = vmatpush.bf16.msra.mxu0 %v788
        %994 = vmatpush.bf16.msra.mxu0 %v784
        %995 = vmatpush.bf16.msra.mxu0 %v780
        %996 = vmatpush.bf16.msra.mxu0 %v776
        %997 = vmatpush.bf16.msra.mxu0 %v772
        %998 = vmatmul.bf16.gmra.mxu0 %v194
        %v999 = vpop.f32.mrf.mxu0
        %v1000 = vadd.f32 %v987, %v999
        %v1001 = vpop.f32.mrf.mxu0
        %1002 = vdwg.mxu0
        %1003 = vmatpush.bf16.msra.mxu0 %v832
        %1004 = vmatpush.bf16.msra.mxu0 %v828
        %1005 = vmatpush.bf16.msra.mxu0 %v824
        %1006 = vmatpush.bf16.msra.mxu0 %v820
        %1007 = vmatpush.bf16.msra.mxu0 %v816
        %1008 = vmatpush.bf16.msra.mxu0 %v812
        %1009 = vmatpush.bf16.msra.mxu0 %v808
        %1010 = vmatpush.bf16.msra.mxu0 %v804
        %1011 = vmatmul.bf16.gmra.mxu0 %v195
        %v1012 = vpop.f32.mrf.mxu0
        %v1013 = vadd.f32 %v1000, %v1012
        %v1014 = vpop.f32.mrf.mxu0
        %1015 = vdwg.mxu0
        %1016 = vmatpush.bf16.msra.mxu0 %v737
        %1017 = vmatpush.bf16.msra.mxu0 %v733
        %1018 = vmatpush.bf16.msra.mxu0 %v729
        %1019 = vmatpush.bf16.msra.mxu0 %v725
        %1020 = vmatpush.bf16.msra.mxu0 %v721
        %1021 = vmatpush.bf16.msra.mxu0 %v717
        %1022 = vmatpush.bf16.msra.mxu0 %v713
        %1023 = vmatpush.bf16.msra.mxu0 %v709
        %1024 = vmatmul.bf16.gmra.mxu0 %v192
        %v1025 = vpop.f32.mrf.mxu0
        %v1026 = vadd.f32 0.0, %v1025
        %v1027 = vpop.f32.mrf.mxu0
        %1028 = vdwg.mxu0
        %1029 = vmatpush.bf16.msra.mxu0 %v769
        %1030 = vmatpush.bf16.msra.mxu0 %v765
        %1031 = vmatpush.bf16.msra.mxu0 %v761
        %1032 = vmatpush.bf16.msra.mxu0 %v757
        %1033 = vmatpush.bf16.msra.mxu0 %v753
        %1034 = vmatpush.bf16.msra.mxu0 %v749
        %1035 = vmatpush.bf16.msra.mxu0 %v745
        %1036 = vmatpush.bf16.msra.mxu0 %v741
        %1037 = vmatmul.bf16.gmra.mxu0 %v193
        %v1038 = vpop.f32.mrf.mxu0
        %v1039 = vadd.f32 %v1026, %v1038
        %v1040 = vpop.f32.mrf.mxu0
        %1041 = vdwg.mxu0
        %1042 = vmatpush.bf16.msra.mxu0 %v801
        %1043 = vmatpush.bf16.msra.mxu0 %v797
        %1044 = vmatpush.bf16.msra.mxu0 %v793
        %1045 = vmatpush.bf16.msra.mxu0 %v789
        %1046 = vmatpush.bf16.msra.mxu0 %v785
        %1047 = vmatpush.bf16.msra.mxu0 %v781
        %1048 = vmatpush.bf16.msra.mxu0 %v777
        %1049 = vmatpush.bf16.msra.mxu0 %v773
        %1050 = vmatmul.bf16.gmra.mxu0 %v194
        %v1051 = vpop.f32.mrf.mxu0
        %v1052 = vadd.f32 %v1039, %v1051
        %v1053 = vpop.f32.mrf.mxu0
        %1054 = vdwg.mxu0
        %1055 = vmatpush.bf16.msra.mxu0 %v833
        %1056 = vmatpush.bf16.msra.mxu0 %v829
        %1057 = vmatpush.bf16.msra.mxu0 %v825
        %1058 = vmatpush.bf16.msra.mxu0 %v821
        %1059 = vmatpush.bf16.msra.mxu0 %v817
        %1060 = vmatpush.bf16.msra.mxu0 %v813
        %1061 = vmatpush.bf16.msra.mxu0 %v809
        %1062 = vmatpush.bf16.msra.mxu0 %v805
        %1063 = vmatmul.bf16.gmra.mxu0 %v195
        %v1064 = vpop.f32.mrf.mxu0
        %v1065 = vadd.f32 %v1052, %v1064
        %v1066 = vpop.f32.mrf.mxu0
        %1067 = vdwg.mxu0
        %1068 = vmatpush.bf16.msra.mxu0 %v738
        %1069 = vmatpush.bf16.msra.mxu0 %v734
        %1070 = vmatpush.bf16.msra.mxu0 %v730
        %1071 = vmatpush.bf16.msra.mxu0 %v726
        %1072 = vmatpush.bf16.msra.mxu0 %v722
        %1073 = vmatpush.bf16.msra.mxu0 %v718
        %1074 = vmatpush.bf16.msra.mxu0 %v714
        %1075 = vmatpush.bf16.msra.mxu0 %v710
        %1076 = vmatmul.bf16.gmra.mxu0 %v192
        %v1077 = vpop.f32.mrf.mxu0
        %v1078 = vadd.f32 0.0, %v1077
        %v1079 = vpop.f32.mrf.mxu0
        %1080 = vdwg.mxu0
        %1081 = vmatpush.bf16.msra.mxu0 %v770
        %1082 = vmatpush.bf16.msra.mxu0 %v766
        %1083 = vmatpush.bf16.msra.mxu0 %v762
        %1084 = vmatpush.bf16.msra.mxu0 %v758
        %1085 = vmatpush.bf16.msra.mxu0 %v754
        %1086 = vmatpush.bf16.msra.mxu0 %v750
        %1087 = vmatpush.bf16.msra.mxu0 %v746
        %1088 = vmatpush.bf16.msra.mxu0 %v742
        %1089 = vmatmul.bf16.gmra.mxu0 %v193
        %v1090 = vpop.f32.mrf.mxu0
        %v1091 = vadd.f32 %v1078, %v1090
        %v1092 = vpop.f32.mrf.mxu0
        %1093 = vdwg.mxu0
        %1094 = vmatpush.bf16.msra.mxu0 %v802
        %1095 = vmatpush.bf16.msra.mxu0 %v798
        %1096 = vmatpush.bf16.msra.mxu0 %v794
        %1097 = vmatpush.bf16.msra.mxu0 %v790
        %1098 = vmatpush.bf16.msra.mxu0 %v786
        %1099 = vmatpush.bf16.msra.mxu0 %v782
        %1100 = vmatpush.bf16.msra.mxu0 %v778
        %1101 = vmatpush.bf16.msra.mxu0 %v774
        %1102 = vmatmul.bf16.gmra.mxu0 %v194
        %v1103 = vpop.f32.mrf.mxu0
        %v1104 = vadd.f32 %v1091, %v1103
        %v1105 = vpop.f32.mrf.mxu0
        %1106 = vdwg.mxu0
        %1107 = vmatpush.bf16.msra.mxu0 %v834
        %1108 = vmatpush.bf16.msra.mxu0 %v830
        %1109 = vmatpush.bf16.msra.mxu0 %v826
        %1110 = vmatpush.bf16.msra.mxu0 %v822
        %1111 = vmatpush.bf16.msra.mxu0 %v818
        %1112 = vmatpush.bf16.msra.mxu0 %v814
        %1113 = vmatpush.bf16.msra.mxu0 %v810
        %1114 = vmatpush.bf16.msra.mxu0 %v806
        %1115 = vmatmul.bf16.gmra.mxu0 %v195
        %v1116 = vpop.f32.mrf.mxu0
        %v1117 = vadd.f32 %v1104, %v1116
        %v1118 = vpop.f32.mrf.mxu0
        %1119 = vdwg.mxu0
        %1120 = vmatpush.bf16.msra.mxu0 %v739
        %1121 = vmatpush.bf16.msra.mxu0 %v735
        %1122 = vmatpush.bf16.msra.mxu0 %v731
        %1123 = vmatpush.bf16.msra.mxu0 %v727
        %1124 = vmatpush.bf16.msra.mxu0 %v723
        %1125 = vmatpush.bf16.msra.mxu0 %v719
        %1126 = vmatpush.bf16.msra.mxu0 %v715
        %1127 = vmatpush.bf16.msra.mxu0 %v711
        %1128 = vmatmul.bf16.gmra.mxu0 %v192
        %v1129 = vpop.f32.mrf.mxu0
        %v1130 = vadd.f32 0.0, %v1129
        %v1131 = vpop.f32.mrf.mxu0
        %1132 = vdwg.mxu0
        %1133 = vmatpush.bf16.msra.mxu0 %v771
        %1134 = vmatpush.bf16.msra.mxu0 %v767
        %1135 = vmatpush.bf16.msra.mxu0 %v763
        %1136 = vmatpush.bf16.msra.mxu0 %v759
        %1137 = vmatpush.bf16.msra.mxu0 %v755
        %1138 = vmatpush.bf16.msra.mxu0 %v751
        %1139 = vmatpush.bf16.msra.mxu0 %v747
        %1140 = vmatpush.bf16.msra.mxu0 %v743
        %1141 = vmatmul.bf16.gmra.mxu0 %v193
        %v1142 = vpop.f32.mrf.mxu0
        %v1143 = vadd.f32 %v1130, %v1142
        %v1144 = vpop.f32.mrf.mxu0
        %1145 = vdwg.mxu0
        %1146 = vmatpush.bf16.msra.mxu0 %v803
        %1147 = vmatpush.bf16.msra.mxu0 %v799
        %1148 = vmatpush.bf16.msra.mxu0 %v795
        %1149 = vmatpush.bf16.msra.mxu0 %v791
        %1150 = vmatpush.bf16.msra.mxu0 %v787
        %1151 = vmatpush.bf16.msra.mxu0 %v783
        %1152 = vmatpush.bf16.msra.mxu0 %v779
        %1153 = vmatpush.bf16.msra.mxu0 %v775
        %1154 = vmatmul.bf16.gmra.mxu0 %v194
        %v1155 = vpop.f32.mrf.mxu0
        %v1156 = vadd.f32 %v1143, %v1155
        %v1157 = vpop.f32.mrf.mxu0
        %1158 = vdwg.mxu0
        %1159 = vmatpush.bf16.msra.mxu0 %v835
        %1160 = vmatpush.bf16.msra.mxu0 %v831
        %1161 = vmatpush.bf16.msra.mxu0 %v827
        %1162 = vmatpush.bf16.msra.mxu0 %v823
        %1163 = vmatpush.bf16.msra.mxu0 %v819
        %1164 = vmatpush.bf16.msra.mxu0 %v815
        %1165 = vmatpush.bf16.msra.mxu0 %v811
        %1166 = vmatpush.bf16.msra.mxu0 %v807
        %1167 = vmatmul.bf16.gmra.mxu0 %v195
        %v1168 = vpop.f32.mrf.mxu0
        %v1169 = vadd.f32 %v1156, %v1168
        %v1170 = vpop.f32.mrf.mxu0
        %1171 = vdwg.mxu0
        %v1176 = vrot.slane %v1065, 6
        %v1177 = vrot.slane %v1117, 4
        %v1178 = vrot.slane %v1169, 2
        %vm1179 = vcmask 1041408
        %v1180 = vsel %vm1179, %v1013, %v1176
        %vm1181 = vcmask 1045508
        %v1182 = vsel %vm1181, %v1177, %v1178
        %vm1183 = vcmask 1043456
        %v1184 = vsel %vm1183, %v1180, %v1182
        %1186 = vst [vmem:[%s178] sm:$0xff] %v1184
        %s1187 = sand.u32 %s75, 1
        %s1188 = scalar_lea.sflag [#allocation4], %s1187
        %s1189 = sand.u32 %s75, 1
        %s1190 = smul.addr %s1189, 8
        %s1191 = scalar_lea.vmem [#allocation7], %s1190
        // Predicated region
        $region37: #{tpu_custom_call.1} parent=27 // pred_check
          %p1192 = pneg %p85
        $region38: #{tpu_custom_call.1} parent=27 // pred_check_branch
          %1194 = sbr.rel (%p1192) target = $region40
        $region39: #{tpu_custom_call.1} parent=27 // pred_region
          %s1195 = smul.u32 4, %s20
          %1197 = vsyncadd %s1188, 0
          %s1198 = smul.addr %s1195, 2
          %s1199 = scalar_lea.hbm %s2, %s1198
          %s1201 = sshll.u32 %s1191, 4
          %s1202 = int_to_ptr.vmem [resolvable:$true] %s1201
          %s1203 = sshll.u32 %s1199, 4
          %s1204 = int_to_ptr.hbm [resolvable:$true] %s1203
          %1206 = dma.vmem_to_hbm [thread:$0]  %s1202, 128, %s1204, %s1188
        $region40: #{tpu_custom_call.1} parent=27 // pred_fallthru
          _
      $region28: #{tpu_custom_call.1} parent=5 // pred_fallthru
        _
      %p1207 = scmp.le.s32.totalorder 2, %s15
      // Predicated region
      $region41: #{tpu_custom_call.1} parent=5 // pred_check
        %p1208 = pneg %p1207
      $region42: #{tpu_custom_call.1} parent=5 // pred_check_branch
        %1210 = sbr.rel (%p1208) target = $region44
      $region43: #{tpu_custom_call.1} parent=5 // pred_region
        %s1211 = ssub.s32 %s15, 2
        // Predicated region
        $region45: #{tpu_custom_call.1} parent=43 // pred_check
          %p1212 = pneg %p91
        $region46: #{tpu_custom_call.1} parent=43 // pred_check_branch
          %1214 = sbr.rel (%p1212) target = $region48
        $region47: #{tpu_custom_call.1} parent=43 // pred_region
          %s1215 = sand.u32 %s76, 1
          %s1216 = scalar_lea.sflag [#allocation4], %s1215
          %s1217 = sand.u32 %s76, 1
          %s1218 = smul.addr %s1217, 8
          %s1219 = scalar_lea.vmem [#allocation7], %s1218
          %1221 = dma.done %s1216, 128
        $region48: #{tpu_custom_call.1} parent=43 // pred_fallthru
          _
      $region44: #{tpu_custom_call.1} parent=5 // pred_fallthru
        _
    $region6: #{tpu_custom_call.1} parent=1 // loop_footer
      %s19 = sadd.s32 1, %s15
    $region7: #{tpu_custom_call.1} parent=1 // loop_footer_branch
      %14 = sbr.rel target = $region3
    $region8: #{tpu_custom_call.1} parent=1 // loop_exit
      _
    %1222 = vsyncpa [#allocation3], 1
    %s1223 = scalar_lea.sflag [#allocation3], 1
    %1224 = vsyncpa %s1223, 1
    %1225 = vsyncpa [#allocation6], 1
    %s1226 = scalar_lea.sflag [#allocation6], 1
    %1227 = vsyncpa %s1226, 1
    %1228 = vsyncpa [#allocation4], 1
    %s1229 = scalar_lea.sflag [#allocation4], 1
    %1230 = vsyncpa %s1229, 1

</llo_original>
